<compile_context>
chip_gen: v6e
topology: v6e:2x2x1
jax: 0.10.0
libtpu: 0.0.40
codegen_flags: <defaults>
</compile_context>

<pallas_src>
from typing import NamedTuple

import jax
import jax.numpy as jnp
from jax.experimental import pallas as pl
from jax.experimental.pallas import tpu as pltpu


def _round_up(x: int, m: int) -> int:
    return ((x + m - 1) // m) * m


class HeadPlan(NamedTuple):
    num_classes: int
    in_channels: int
    tm: int
    tn: int
    tk: int
    Np: int            # padded num_classes
    Kp: int            # padded in_channels
    collapse_k: bool   # True -> single K tile, no accumulator scratch
    compute_dtype: jnp.dtype
    out_dtype: jnp.dtype
    vmem_limit_bytes: int


# --------------------------------------------------------------------------
# Kernels
# --------------------------------------------------------------------------
def _linear_head_kernel_fused(x_ref, w_ref, b_ref, o_ref):
    # x_ref: (tm, Kp) compute dtype, w_ref: (Kp, tn) compute dtype (weight is
    # pre-transposed to K-major so no in-kernel transpose is needed),
    # b_ref: (1, tn) f32, o_ref: (tm, tn) out dtype.
    o_ref[...] = (
        jnp.dot(x_ref[...], w_ref[...], preferred_element_type=jnp.float32)
        + b_ref[...]
    ).astype(o_ref.dtype)


def _linear_head_kernel_kloop(x_ref, w_ref, b_ref, o_ref, acc_ref):
    # Only used when C_in is too large for a single K tile.
    k = pl.program_id(2)

    @pl.when(k == 0)
    def _():
        acc_ref[...] = jnp.zeros_like(acc_ref)

    acc_ref[...] += jnp.dot(
        x_ref[...], w_ref[...], preferred_element_type=jnp.float32
    )

    @pl.when(k == pl.num_programs(2) - 1)
    def _():
        o_ref[...] = (acc_ref[...] + b_ref[...]).astype(o_ref.dtype)


# --------------------------------------------------------------------------
# Planning (one-time) + parameter staging (one-time)
# --------------------------------------------------------------------------
def make_linear_cls_head_plan(batch_size, num_classes, in_channels, *,
                              out_dtype=jnp.float32,
                              compute_dtype=jnp.float32,
                              vmem_budget_bytes=28 * 1024 * 1024):
    if num_classes <= 0:
        raise ValueError(f"num_classes={num_classes} must be a positive integer")

    cbytes = jnp.dtype(compute_dtype).itemsize
    obytes = jnp.dtype(out_dtype).itemsize

    Kp_full = _round_up(in_channels, 128)
    Np_full = _round_up(num_classes, 128)

    # One batch tile when possible so the (large) weight is streamed from HBM
    # exactly once per forward (weight-bound GEMM: HBM traffic ~ Bp/tm copies).
    tm = min(_round_up(batch_size, 8), 512)

    def fits(tm_, tn_, tk_, collapse_):
        # double-buffered x/w/out tiles + bias row + f32 accumulator (K-loop only)
        buf = (2 * (tm_ * tk_ + tk_ * tn_) * cbytes
               + 2 * tm_ * tn_ * obytes
               + 2 * tn_ * 4)
        if not collapse_:
            buf += tm_ * tn_ * 4
        return buf <= vmem_budget_bytes

    tn_candidates = sorted({min(c, Np_full) for c in (2048, 1024, 512, 256, 128)},
                           reverse=True)
    tn_min = tn_candidates[-1]

    # Collapse the reduction axis into a single tile whenever it fits.
    collapse_k = fits(tm, tn_min, Kp_full, True)
    if collapse_k:
        tk = Kp_full
    else:
        tk = min(Kp_full, 2048)
        while not fits(tm, tn_min, tk, False) and tm > 8:
            tm = max(8, tm // 2)

    fitting = [t for t in tn_candidates if fits(tm, t, tk, collapse_k)] or [tn_min]
    single_m_tile = (_round_up(batch_size, tm) // tm) == 1
    if single_m_tile:
        # Keep >= 2 j-tiles when possible so v7x's two TensorCores can split
        # the only "parallel" axis that has more than one tile.
        multi_j = [t for t in fitting if -(-num_classes // t) >= 2]
        tn = multi_j[0] if multi_j else fitting[0]
    else:
        tn = fitting[0]

    Np = _round_up(num_classes, tn)
    Kp = Kp_full if collapse_k else _round_up(in_channels, tk)

    # Past the 16/32 MiB scoped defaults (v5e / v6e,v7x) but under v7x's
    # 64 MiB physical VMEM.
    vmem_limit_bytes = 48 * 1024 * 1024

    return HeadPlan(num_classes, in_channels, tm, tn, tk, Np, Kp, collapse_k,
                    jnp.dtype(compute_dtype), jnp.dtype(out_dtype),
                    vmem_limit_bytes)


def prepare_linear_cls_head_params(weight, bias, plan: HeadPlan):
    """One-time staging: cast, transpose to (C_in, N), zero-pad to tiles.

    weight: (num_classes, in_channels)  -- PyTorch nn.Linear layout
    bias:   (num_classes,)
    Returns (w_kn, b_row) ready for the hot-path forward.
    """
    N, C_in = weight.shape
    assert (N, C_in) == (plan.num_classes, plan.in_channels)
    w_kn = jnp.pad(weight.astype(plan.compute_dtype).T,
                   ((0, plan.Kp - C_in), (0, plan.Np - N)))
    b_row = jnp.pad(bias.astype(jnp.float32), (0, plan.Np - N)).reshape(1, plan.Np)
    return w_kn, b_row


# --------------------------------------------------------------------------
# Hot-path forward (weight already staged)
# --------------------------------------------------------------------------
def linear_cls_head_forward_prestaged(feats, w_kn, b_row, plan: HeadPlan):
    B, C_in = feats.shape
    assert C_in == plan.in_channels
    assert w_kn.shape == (plan.Kp, plan.Np)
    assert b_row.shape == (1, plan.Np)

    tm, tn, tk = plan.tm, plan.tn, plan.tk
    Bp = _round_up(B, tm)

    x = feats.astype(plan.compute_dtype)
    if (Bp, plan.Kp) != (B, C_in):
        x = jnp.pad(x, ((0, Bp - B), (0, plan.Kp - C_in)))

    gm, gn = Bp // tm, plan.Np // tn

    if plan.collapse_k:
        kernel = _linear_head_kernel_fused
        grid = (gm, gn)
        in_specs = [
            pl.BlockSpec((tm, tk), lambda i, j: (i, 0)),     # activations
            pl.BlockSpec((tk, tn), lambda i, j: (0, j)),     # weight (C_in, N)
            pl.BlockSpec((1, tn), lambda i, j: (0, j)),      # bias row
        ]
        out_specs = pl.BlockSpec((tm, tn), lambda i, j: (i, j))
        scratch_shapes = []
        dims = ("parallel", "parallel")
    else:
        kernel = _linear_head_kernel_kloop
        gk = plan.Kp // tk
        grid = (gm, gn, gk)
        in_specs = [
            pl.BlockSpec((tm, tk), lambda i, j, k: (i, k)),
            pl.BlockSpec((tk, tn), lambda i, j, k: (k, j)),
            pl.BlockSpec((1, tn), lambda i, j, k: (0, j)),
        ]
        out_specs = pl.BlockSpec((tm, tn), lambda i, j, k: (i, j))
        scratch_shapes = [pltpu.VMEM((tm, tn), jnp.float32)]
        dims = ("parallel", "parallel", "arbitrary")

    out_padded = pl.pallas_call(
        kernel,
        out_shape=jax.ShapeDtypeStruct((Bp, plan.Np), plan.out_dtype),
        grid_spec=pltpu.PrefetchScalarGridSpec(
            num_scalar_prefetch=0,
            grid=grid,
            in_specs=in_specs,
            out_specs=out_specs,
            scratch_shapes=scratch_shapes,
        ),
        compiler_params=pltpu.CompilerParams(
            dimension_semantics=dims,
            vmem_limit_bytes=plan.vmem_limit_bytes,
        ),
    )(x, w_kn, b_row)

    return out_padded[:B, :plan.num_classes]


# --------------------------------------------------------------------------
# Convenience entry point (matches the PyTorch module's forward)
# --------------------------------------------------------------------------
def linear_cls_head_forward(feats, weight, bias, *, compute_dtype=None,
                            use_pallas=None):
    """y = feats @ weight.T + bias.

    compute_dtype=None keeps the input dtype (exact f32 path); pass
    jnp.bfloat16 to opt into the halved-weight-bandwidth bf16 path.
    """
    B, C_in = feats.shape
    N = weight.shape[0]
    if use_pallas is None:
        # Tiny heads: a standalone pallas_call + padding cannot beat fused XLA.
        use_pallas = (N * C_in) >= 1_000_000
    if not use_pallas:
        return (feats @ weight.T + bias).astype(feats.dtype)

    cdt = feats.dtype if compute_dtype is None else compute_dtype
    plan = make_linear_cls_head_plan(B, N, C_in,
                                     out_dtype=feats.dtype, compute_dtype=cdt)
    w_kn, b_row = prepare_linear_cls_head_params(weight, bias, plan)
    return linear_cls_head_forward_prestaged(feats, w_kn, b_row, plan)


def reference_forward(feats, weight, bias):
    return feats @ weight.T + bias


if __name__ == "__main__":
    # Small shapes consistent with the module: batch=2, in_channels=32, num_classes=10
    B, C_IN, NUM_CLASSES = 2, 32, 10

    key = jax.random.PRNGKey(0)
    k_x, k_w, k_b = jax.random.split(key, 3)

    feats = jax.random.normal(k_x, (B, C_IN), dtype=jnp.float32)
    bound = 1.0 / (C_IN ** 0.5)
    weight = jax.random.uniform(k_w, (NUM_CLASSES, C_IN), jnp.float32, -bound, bound)
    bias = jax.random.uniform(k_b, (NUM_CLASSES,), jnp.float32, -bound, bound)

    ref = reference_forward(feats, weight, bias)

    # 1) Exact f32 Pallas path via the pre-staged (one-time weight prep) flow.
    plan_f32 = make_linear_cls_head_plan(B, NUM_CLASSES, C_IN,
                                         out_dtype=jnp.float32,
                                         compute_dtype=jnp.float32)
    w_kn, b_row = prepare_linear_cls_head_params(weight, bias, plan_f32)
    out_f32 = jax.block_until_ready(
        linear_cls_head_forward_prestaged(feats, w_kn, b_row, plan_f32))
    assert out_f32.shape == (B, NUM_CLASSES)
    assert jnp.allclose(out_f32, ref, atol=1e-5, rtol=1e-5), (out_f32, ref)

    # 2) Opt-in bf16 compute path (halved weight HBM bytes) through the kernel.
    out_bf16 = jax.block_until_ready(
        linear_cls_head_forward(feats, weight, bias,
                                compute_dtype=jnp.bfloat16, use_pallas=True))
    assert out_bf16.shape == (B, NUM_CLASSES)
    assert jnp.allclose(out_bf16, ref, atol=3e-2, rtol=3e-2), (out_bf16, ref)

    # 3) Small-problem auto-dispatch (falls back to fused XLA for this tiny head).
    out_auto = jax.block_until_ready(linear_cls_head_forward(feats, weight, bias))
    assert jnp.allclose(out_auto, ref, atol=1e-5, rtol=1e-5), (out_auto, ref)

    # TODO(synk): pre_logits()/print side effects and loss_module construction in the
    # PyTorch module are not part of the forward compute and are intentionally omitted.
    print("KERNEL_OK")
</pallas_src>

<mosaic_0001>
module attributes {stable_mosaic.version = 11 : i64} {
  func.func @_linear_head_kernel_fused(%arg0: i32, %arg1: i32, %arg2: memref<8x128xf32, #tpu.memory_space<vmem>>, %arg3: memref<128x128xf32, #tpu.memory_space<vmem>>, %arg4: memref<1x128xf32, #tpu.memory_space<vmem>>, %arg5: memref<8x128xf32, #tpu.memory_space<vmem>>) attributes {dimension_semantics = [#tpu.dimension_semantics<parallel>, #tpu.dimension_semantics<parallel>], iteration_bounds = array<i64: 1, 1>, scalar_prefetch = 0 : i64, scratch_operands = 0 : i64, tpu.core_type = #tpu.core_type<tc>, window_params = [{transform_indices = @transform_0, window_bounds = array<i64: 8, 128>}, {transform_indices = @transform_1, window_bounds = array<i64: 128, 128>}, {transform_indices = @transform_2, window_bounds = array<i64: 1, 128>}, {transform_indices = @transform_3, window_bounds = array<i64: 8, 128>}]} {
    %c0 = arith.constant 0 : index
    %c0_0 = arith.constant 0 : index
    %0 = vector.load %arg2[%c0, %c0_0] : memref<8x128xf32, #tpu.memory_space<vmem>>, vector<8x128xf32>
    %c0_1 = arith.constant 0 : index
    %c0_2 = arith.constant 0 : index
    %1 = vector.load %arg3[%c0_1, %c0_2] : memref<128x128xf32, #tpu.memory_space<vmem>>, vector<128x128xf32>
    %cst = arith.constant dense<0.000000e+00> : vector<8x128xf32>
    %2 = tpu.matmul %0, %1, %cst {dimension_numbers = #tpu.dot_dimension_numbers<[1], [0], [0], [1], [0, 0, 1, 1], [], []>} : vector<8x128xf32>, vector<128x128xf32>, vector<8x128xf32> -> vector<8x128xf32>
    %c0_3 = arith.constant 0 : index
    %c0_4 = arith.constant 0 : index
    %3 = vector.load %arg4[%c0_3, %c0_4] : memref<1x128xf32, #tpu.memory_space<vmem>>, vector<1x128xf32>
    %4 = vector.broadcast %3 : vector<1x128xf32> to vector<8x128xf32>
    %5 = arith.addf %2, %4 : vector<8x128xf32>
    %c0_5 = arith.constant 0 : index
    %c0_6 = arith.constant 0 : index
    %6 = vector.load %arg5[%c0_5, %c0_6] : memref<8x128xf32, #tpu.memory_space<vmem>>, vector<8x128xf32>
    tpu.vector_store %arg5[%c0_5, %c0_6], %5 {strides = array<i32>} : memref<8x128xf32, #tpu.memory_space<vmem>>, vector<8x128xf32>,
    return
  }
  func.func @transform_0(%arg0: i32, %arg1: i32) -> (i32, i32) {
    %c0_i32 = arith.constant 0 : i32
    %c0_i32_0 = arith.constant 0 : i32
    return %arg0, %c0_i32 : i32, i32
  }
  func.func @transform_1(%arg0: i32, %arg1: i32) -> (i32, i32) {
    %c0_i32 = arith.constant 0 : i32
    %c0_i32_0 = arith.constant 0 : i32
    return %c0_i32, %arg1 : i32, i32
  }
  func.func @transform_2(%arg0: i32, %arg1: i32) -> (i32, i32) {
    %c0_i32 = arith.constant 0 : i32
    %c0_i32_0 = arith.constant 0 : i32
    return %c0_i32, %arg1 : i32, i32
  }
  func.func @transform_3(%arg0: i32, %arg1: i32) -> (i32, i32) {
    %c0_i32 = arith.constant 0 : i32
    return %arg0, %arg1 : i32, i32
  }
}

</mosaic_0001>

<llo_original>
// kernel: tpu_custom_call.1
$region0: #{tpu_custom_call.1}
  #allocation0 [shape = 'u32[]', space=smem, size = 0x4, offset = 0x4, fixed_abs, tag = 'smem constant byte address 0x4 - core index']
  #allocation1 [shape = 'u32[144,128]{1,0:T(1,128)}', space=vmem, size = 0x12000, scoped, tag = 'internal scratch']
  %s0 = inlined_call_operand.hbm [shape: f32[8,128], index: 0, kind: input, shape index: {}]
  %s1 = inlined_call_operand.hbm [shape: f32[128,128], index: 1, kind: input, shape index: {}]
  %s2 = inlined_call_operand.vmem [shape: f32[1,128], index: 2, kind: input, shape index: {}]
  %s3 = inlined_call_operand.hbm [shape: f32[8,128], index: 3, kind: output, shape index: {}]
  %s4 = sld [smem:[#allocation0]]
  $region30: #{tpu_custom_call.1} parent=0
    _
  %s6 = ssub.s32 1, %s4
  %s7 = scalar_select 0, %s6, %s4
  $region1: #{tpu_custom_call.1} parent=0
    #allocation2 [shape = 'u8[4096]{0}', space=vmem, size = 0x1000, scoped, tag = 'input window, operand 0, single buffered']
    #allocation3 [shape = 's32[1]{0}', space=sflag, size = 0x4, scoped, tag = 'scoped memory for tpu_custom_call.1']
    #allocation4 [shape = 's32[1]{0}', space=sflag, size = 0x4, scoped, tag = 'scoped memory for tpu_custom_call.1']
    #allocation5 [shape = 'u8[65536]{0}', space=vmem, size = 0x10000, scoped, tag = 'input window, operand 1, single buffered']
    #allocation6 [shape = 's32[1]{0}', space=sflag, size = 0x4, scoped, tag = 'scoped memory for tpu_custom_call.1']
    #allocation7 [shape = 'u8[4096]{0}', space=vmem, size = 0x1000, scoped, tag = 'output window, operand 0, single buffered']
    %8 = vsyncpa [#allocation3], 0
    %9 = vsyncpa [#allocation6], 0
    %10 = vsyncpa [#allocation4], 0
    // Predicated region
    $region2: #{tpu_custom_call.1} parent=1 // pred_check
      _
    $region3: #{tpu_custom_call.1} parent=1 // pred_check_branch
      %12 = sbr.rel (0) target = $region5
    $region4: #{tpu_custom_call.1} parent=1 // pred_region
      %s14 = ssub.s32 128, 128
      %15 = vsyncadd [#allocation3], %s14
      %s17 = sshll.u32 [#allocation2], 4
      %s18 = int_to_ptr.vmem [resolvable:$true] %s17
      %20 = dma.hbm_to_vmem [thread:$0]  %s0, 128, %s18, [#allocation3]
    $region5: #{tpu_custom_call.1} parent=1 // pred_fallthru
      _
    // Predicated region
    $region6: #{tpu_custom_call.1} parent=1 // pred_check
      _
    $region7: #{tpu_custom_call.1} parent=1 // pred_check_branch
      %22 = sbr.rel (0) target = $region9
    $region8: #{tpu_custom_call.1} parent=1 // pred_region
      %s24 = ssub.s32 2048, 2048
      %25 = vsyncadd [#allocation6], %s24
      %s26 = sshll.u32 [#allocation5], 4
      %s27 = int_to_ptr.vmem [resolvable:$true] %s26
      %32 = dma.hbm_to_vmem [thread:$0]  %s1, 2048, %s27, [#allocation6], 128, 128, 8
    $region9: #{tpu_custom_call.1} parent=1 // pred_fallthru
      _
    // Predicated region
    $region10: #{tpu_custom_call.1} parent=1 // pred_check
      _
    $region11: #{tpu_custom_call.1} parent=1 // pred_check_branch
      %34 = sbr.rel (0) target = $region13
    $region12: #{tpu_custom_call.1} parent=1 // pred_region
      _
    $region13: #{tpu_custom_call.1} parent=1 // pred_fallthru
      _
    // Predicated region
    $region14: #{tpu_custom_call.1} parent=1 // pred_check
      _
    $region15: #{tpu_custom_call.1} parent=1 // pred_check_branch
      %36 = sbr.rel (0) target = $region17
    $region16: #{tpu_custom_call.1} parent=1 // pred_region
      %37 = dma.done [#allocation3], 128
    $region17: #{tpu_custom_call.1} parent=1 // pred_fallthru
      _
    // Predicated region
    $region18: #{tpu_custom_call.1} parent=1 // pred_check
      _
    $region19: #{tpu_custom_call.1} parent=1 // pred_check_branch
      %39 = sbr.rel (0) target = $region21
    $region20: #{tpu_custom_call.1} parent=1 // pred_region
      %40 = dma.done [#allocation6], 2048
    $region21: #{tpu_custom_call.1} parent=1 // pred_fallthru
      _
    %v41 = vld [vmem:[#allocation2] sm:$0xff]
    %v42 = vld [vmem:[#allocation5] sm:$0xff]
    %v43 = vld [vmem:[#allocation5 + $0x8] sm:$0xff]
    %v44 = vld [vmem:[#allocation5 + $0x10] sm:$0xff]
    %v45 = vld [vmem:[#allocation5 + $0x18] sm:$0xff]
    %v46 = vld [vmem:[#allocation5 + $0x20] sm:$0xff]
    %v47 = vld [vmem:[#allocation5 + $0x28] sm:$0xff]
    %v48 = vld [vmem:[#allocation5 + $0x30] sm:$0xff]
    %v49 = vld [vmem:[#allocation5 + $0x38] sm:$0xff]
    %v50 = vld [vmem:[#allocation5 + $0x40] sm:$0xff]
    %v51 = vld [vmem:[#allocation5 + $0x48] sm:$0xff]
    %v52 = vld [vmem:[#allocation5 + $0x50] sm:$0xff]
    %v53 = vld [vmem:[#allocation5 + $0x58] sm:$0xff]
    %v54 = vld [vmem:[#allocation5 + $0x60] sm:$0xff]
    %v55 = vld [vmem:[#allocation5 + $0x68] sm:$0xff]
    %v56 = vld [vmem:[#allocation5 + $0x70] sm:$0xff]
    %v57 = vld [vmem:[#allocation5 + $0x78] sm:$0xff]
    %v58 = vld [vmem:[%s2] sm:$0x1]
    %v60 = vlaneseq
    %v61 = vshrl.u32 %v60, 7
    %v62 = vsub.s32 0, %v61
    %v63 = vrot.slane %v58, %v62
    %65 = vmatprep.subr.mxu0 0.0
    %66 = vmatpush1.msra.mxu0 %v57
    %67 = vmatprep.subr.mxu0 0.0
    %68 = vmatpush1.msra.mxu0 %v56
    %69 = vmatprep.subr.mxu0 0.0
    %70 = vmatpush1.msra.mxu0 %v55
    %71 = vmatprep.subr.mxu0 0.0
    %72 = vmatpush1.msra.mxu0 %v54
    %73 = vmatprep.subr.mxu0 0.0
    %74 = vmatpush1.msra.mxu0 %v53
    %75 = vmatprep.subr.mxu0 0.0
    %76 = vmatpush1.msra.mxu0 %v52
    %77 = vmatprep.subr.mxu0 0.0
    %78 = vmatpush1.msra.mxu0 %v51
    %79 = vmatprep.subr.mxu0 0.0
    %80 = vmatpush1.msra.mxu0 %v50
    %81 = vmatprep.subr.mxu0 0.0
    %82 = vmatpush1.msra.mxu0 %v49
    %83 = vmatprep.subr.mxu0 0.0
    %84 = vmatpush1.msra.mxu0 %v48
    %85 = vmatprep.subr.mxu0 0.0
    %86 = vmatpush1.msra.mxu0 %v47
    %87 = vmatprep.subr.mxu0 0.0
    %88 = vmatpush1.msra.mxu0 %v46
    %89 = vmatprep.subr.mxu0 0.0
    %90 = vmatpush1.msra.mxu0 %v45
    %91 = vmatprep.subr.mxu0 0.0
    %92 = vmatpush1.msra.mxu0 %v44
    %93 = vmatprep.subr.mxu0 0.0
    %94 = vmatpush1.msra.mxu0 %v43
    %95 = vmatprep.subr.mxu0 0.0
    %96 = vmatpush1.msra.mxu0 %v42
    %97 = vmatprep.subr.mxu0 0.0
    %98 = vmatpush2.msra.mxu0 0.0
    %99 = vmatprep.subr.mxu0 0.0
    %100 = vmatpush2.msra.mxu0 0.0
    %101 = vmatprep.subr.mxu0 0.0
    %102 = vmatpush2.msra.mxu0 0.0
    %103 = vmatprep.subr.mxu0 0.0
    %104 = vmatpush2.msra.mxu0 0.0
    %105 = vmatprep.subr.mxu0 0.0
    %106 = vmatpush2.msra.mxu0 0.0
    %107 = vmatprep.subr.mxu0 0.0
    %108 = vmatpush2.msra.mxu0 0.0
    %109 = vmatprep.subr.mxu0 0.0
    %110 = vmatpush2.msra.mxu0 0.0
    %111 = vmatprep.subr.mxu0 0.0
    %112 = vmatpush2.msra.mxu0 0.0
    %113 = vmatprep.subr.mxu0 0.0
    %114 = vmatpush2.msra.mxu0 0.0
    %115 = vmatprep.subr.mxu0 0.0
    %116 = vmatpush2.msra.mxu0 0.0
    %117 = vmatprep.subr.mxu0 0.0
    %118 = vmatpush2.msra.mxu0 0.0
    %119 = vmatprep.subr.mxu0 0.0
    %120 = vmatpush2.msra.mxu0 0.0
    %121 = vmatprep.subr.mxu0 0.0
    %122 = vmatpush2.msra.mxu0 0.0
    %123 = vmatprep.subr.mxu0 0.0
    %124 = vmatpush2.msra.mxu0 0.0
    %125 = vmatprep.subr.mxu0 0.0
    %126 = vmatpush2.msra.mxu0 0.0
    %127 = vmatprep.subr.mxu0 0.0
    %128 = vmatpush2.msra.mxu0 0.0
    %129 = vmatprep.mubr.f32.mxu0 0.0
    %130 = vmatmul.mubr.f32.gmra.mxu0 %v41
    %v131 = vpop.f32.mrf.mxu0
    %v132 = vadd.f32 %v63, %v131
    %v133 = vpop.f32.mrf.mxu0
    %134 = vdwg.mxu0
    %135 = vst [vmem:[#allocation7] sm:$0xff] %v132
    // Predicated region
    $region22: #{tpu_custom_call.1} parent=1 // pred_check
      _
    $region23: #{tpu_custom_call.1} parent=1 // pred_check_branch
      %137 = sbr.rel (0) target = $region25
    $region24: #{tpu_custom_call.1} parent=1 // pred_region
      %s139 = ssub.s32 128, 128
      %140 = vsyncadd [#allocation4], %s139
      %s142 = sshll.u32 [#allocation7], 4
      %s143 = int_to_ptr.vmem [resolvable:$true] %s142
      %145 = dma.vmem_to_hbm [thread:$0]  %s143, 128, %s3, [#allocation4]
    $region25: #{tpu_custom_call.1} parent=1 // pred_fallthru
      _
    // Predicated region
    $region26: #{tpu_custom_call.1} parent=1 // pred_check
      _
    $region27: #{tpu_custom_call.1} parent=1 // pred_check_branch
      %147 = sbr.rel (0) target = $region29
    $region28: #{tpu_custom_call.1} parent=1 // pred_region
      %148 = dma.done [#allocation4], 128
    $region29: #{tpu_custom_call.1} parent=1 // pred_fallthru
      _
    %149 = vsyncpa [#allocation3], 1
    %150 = vsyncpa [#allocation6], 1
    %151 = vsyncpa [#allocation4], 1

</llo_original>
